<compile_context>
chip_gen: v6e
topology: v6e:2x2x1
jax: 0.10.0
libtpu: 0.0.40
codegen_flags: <defaults>
</compile_context>

<pallas_src>
import functools

import jax
import jax.numpy as jnp
from jax.experimental import pallas as pl
from jax.experimental.pallas import tpu as pltpu


def _round_up(x, m):
    return ((x + m - 1) // m) * m


def _cdiv(a, b):
    return -(-a // b)


def _tpu_defaults():
    """Per-generation (vmem_budget_bytes, tile_b_max, mxu_width, n_tensorcores)."""
    kind = ""
    try:
        kind = jax.devices()[0].device_kind.lower()
    except Exception:
        pass
    if "v7" in kind:
        return 48 * 2**20, 1024, 256, 2     # 64 MiB VMEM / TC, 2 TCs per chip
    if "v6" in kind:
        return 96 * 2**20, 2048, 256, 1     # 128 MiB VMEM, 256-wide MXU
    return 96 * 2**20, 2048, 128, 1         # v5e / unknown: 128-wide MXU


# ----------------------------------------------------------------------------
# Kernel
# ----------------------------------------------------------------------------
def _fused_mlp_kernel(n_hidden, act, compute_dtype,
                      x_ref, w0_ref, wh_ref, wf_ref, bh_ref, bf_ref, o_ref):
    """One batch tile of the fused (mean || logvar) MLP.

    x_ref  : (TILE_B, F0)              compute_dtype   (pipelined)
    w0_ref : (F0, H)                   compute_dtype   (VMEM-resident)
    wh_ref : (max(n_hidden,1), H, H)   compute_dtype   (VMEM-resident)
    wf_ref : (H, OUT_PAD)              compute_dtype   (VMEM-resident)
    bh_ref : (n_hidden+1, 1, H)        float32         (layer-0 + hidden biases)
    bf_ref : (1, OUT_PAD)              float32
    o_ref  : (TILE_B, OUT_PAD)         slab dtype      (lane-dense store)
    """
    h = act(jnp.dot(x_ref[...], w0_ref[...],
                    preferred_element_type=jnp.float32) + bh_ref[0]
            ).astype(compute_dtype)
    for l in range(n_hidden):                      # static unroll
        h = act(jnp.dot(h, wh_ref[l],
                        preferred_element_type=jnp.float32) + bh_ref[l + 1]
                ).astype(compute_dtype)
    out = jnp.dot(h, wf_ref[...], preferred_element_type=jnp.float32) + bf_ref[...]
    o_ref[...] = out.astype(o_ref.dtype)


# ----------------------------------------------------------------------------
# Parameter construction / packing
# ----------------------------------------------------------------------------
def _init_mlp_params(key, in_dim, hidden, out_dim, n_layers, dtype=jnp.float32):
    """Synthetic MLP params: n_layers hidden layers + output layer (W, b pairs)."""
    params = []
    dims = [in_dim] + [hidden] * n_layers + [out_dim]
    for l in range(n_layers + 1):
        key, kw, kb = jax.random.split(key, 3)
        fan_in = dims[l]
        w = jax.random.normal(kw, (dims[l], dims[l + 1]), dtype) * (1.0 / jnp.sqrt(fan_in))
        b = 0.1 * jax.random.normal(kb, (1, dims[l + 1]), dtype)
        params += [w, b]
    return params, key


def _pack_fused_layers(mean_params, logvar_params, n_layers, F0, H, out_pad):
    """Pack the two branches into per-layer fused (block-diagonal) weights/biases.

    Padded rows/cols stay zero -> padded lanes never feed real outputs.
    """
    enc_in, gen = mean_params[0].shape
    dim_z = mean_params[2 * n_layers].shape[1]
    n_hidden = n_layers - 1
    assert 2 * gen <= H and 2 * dim_z <= out_pad and enc_in <= F0

    w0 = jnp.zeros((F0, H), jnp.float32)
    w0 = w0.at[:enc_in, :gen].set(mean_params[0])
    w0 = w0.at[:enc_in, gen:2 * gen].set(logvar_params[0])

    bh = jnp.zeros((n_hidden + 1, 1, H), jnp.float32)
    bh = bh.at[0, :, :gen].set(mean_params[1])
    bh = bh.at[0, :, gen:2 * gen].set(logvar_params[1])

    wh = jnp.zeros((max(n_hidden, 1), H, H), jnp.float32)
    for l in range(n_hidden):
        wm, bm = mean_params[2 * (l + 1)], mean_params[2 * (l + 1) + 1]
        wl, bl = logvar_params[2 * (l + 1)], logvar_params[2 * (l + 1) + 1]
        wh = wh.at[l, :gen, :gen].set(wm)
        wh = wh.at[l, gen:2 * gen, gen:2 * gen].set(wl)
        bh = bh.at[l + 1, :, :gen].set(bm)
        bh = bh.at[l + 1, :, gen:2 * gen].set(bl)

    wf = jnp.zeros((H, out_pad), jnp.float32)
    wf = wf.at[:gen, :dim_z].set(mean_params[2 * n_layers])
    wf = wf.at[gen:2 * gen, dim_z:2 * dim_z].set(logvar_params[2 * n_layers])
    bf = jnp.zeros((1, out_pad), jnp.float32)
    bf = bf.at[:, :dim_z].set(mean_params[2 * n_layers + 1])
    bf = bf.at[:, dim_z:2 * dim_z].set(logvar_params[2 * n_layers + 1])
    return w0, wh, wf, bh, bf


# ----------------------------------------------------------------------------
# Module wrapper
# ----------------------------------------------------------------------------
class EncoderVAEPallas:
    """JAX/Pallas port of EncoderVAE (forward pass only)."""

    def __init__(self, dim_x, gen_nodes_x, n_layers_x, dim_u, dim_z,
                 act_x=jnp.tanh, gen_nodes_u=None, act_u=None, n_layers_u=None,
                 full_posterior=True, u_in_encoderx=False,
                 compute_dtype=jnp.bfloat16, slab_dtype=None,
                 tile_b_max=None, vmem_budget_bytes=None, key=None):
        # gen_nodes_u / act_u / n_layers_u / full_posterior are accepted for
        # signature fidelity but (as in the PyTorch forward) unused here.
        self.dim_x = dim_x
        self.dim_u = dim_u
        self.dim_z = dim_z
        self.gen_nodes_x = gen_nodes_x
        self.n_layers_x = n_layers_x
        self.u_in_encoderx = u_in_encoderx
        self.full_posterior = full_posterior
        self.act = act_x
        self.compute_dtype = compute_dtype
        self.slab_dtype = slab_dtype

        budget, tbmax, mxu_w, n_tc = _tpu_defaults()
        self.vmem_budget = int(vmem_budget_bytes or budget)
        self.tile_b_max = int(tile_b_max or tbmax)
        self.n_tc = n_tc

        if key is None:
            key = jax.random.PRNGKey(0)
        self.enc_in = dim_x + dim_u if u_in_encoderx else dim_x

        # Raw per-branch params (also used by the plain-JAX reference).
        self.mean_params, key = _init_mlp_params(key, self.enc_in, gen_nodes_x,
                                                 dim_z, n_layers_x)
        self.logvar_params, key = _init_mlp_params(key, self.enc_in, gen_nodes_x,
                                                   dim_z, n_layers_x)

        # Per-layer padded widths (not one common max width).
        self.F0 = _round_up(self.enc_in, 128)
        two_h = 2 * gen_nodes_x
        # 256-align the fused hidden width on v6e/v7x only when it is already >128.
        self.H = _round_up(two_h, 128) if two_h <= 128 else _round_up(two_h, mxu_w)
        self.out_pad = _round_up(2 * dim_z, 128)

        w0, wh, wf, bh, bf = _pack_fused_layers(
            self.mean_params, self.logvar_params, n_layers_x,
            self.F0, self.H, self.out_pad)
        self.w0 = w0.astype(compute_dtype)   # MXU inputs
        self.wh = wh.astype(compute_dtype)
        self.wf = wf.astype(compute_dtype)
        self.bh = bh                          # f32, added post-accumulate
        self.bf = bf

    # -- tiling ---------------------------------------------------------------
    def _pick_tile(self, B, slab_itemsize):
        cdb = jnp.dtype(self.compute_dtype).itemsize
        n_tiles = max(1, _cdiv(B, self.tile_b_max))
        if self.n_tc >= 2 and B >= 32:
            n_tiles = max(n_tiles, 2)          # shard batch across both v7x TCs
        tile_b = _round_up(_cdiv(B, n_tiles), 16)   # 16 = bf16 sublane packing

        n_h_eff = max(self.n_layers_x - 1, 1)
        w_bytes = ((self.F0 * self.H + n_h_eff * self.H * self.H
                    + self.H * self.out_pad) * cdb
                   + (self.n_layers_x * self.H + self.out_pad) * 4)

        def tile_bytes(tb):
            return (2 * tb * self.F0 * cdb                 # x tile, double-buffered
                    + 2 * tb * self.out_pad * slab_itemsize  # out tile, double-buffered
                    + tb * self.H * (4 + cdb)              # f32 pre-act + bf16 h
                    + tb * self.out_pad * 4)               # f32 final accumulator

        while tile_b > 16 and w_bytes + tile_bytes(tile_b) > self.vmem_budget:
            tile_b = max(16, _round_up(tile_b // 2, 16))
        return tile_b

    # -- forward --------------------------------------------------------------
    def __call__(self, x, u):
        if self.u_in_encoderx:
            x = jnp.concatenate([x, u], axis=-1)   # glue: torch.cat([x, u], dim=-1)
        assert x.shape[-1] == self.enc_in
        B = x.shape[0]
        out_dtype = x.dtype
        slab_dtype = self.slab_dtype or out_dtype

        F0, H, out_pad = self.F0, self.H, self.out_pad
        n_hidden = self.n_layers_x - 1
        n_h_eff = max(n_hidden, 1)

        tile_b = self._pick_tile(B, jnp.dtype(slab_dtype).itemsize)
        b_pad = _round_up(B, tile_b)
        grid = (b_pad // tile_b,)

        # One cheap pad (batch remainder + <=127 feature lanes); no zero slab.
        xc = x.astype(self.compute_dtype)
        if b_pad != B or F0 != self.enc_in:
            xc = jnp.pad(xc, ((0, b_pad - B), (0, F0 - self.enc_in)))

        kernel = functools.partial(_fused_mlp_kernel, n_hidden, self.act,
                                   self.compute_dtype)

        def launch(single_buffer_weights):
            wkw = dict(pipeline_mode=pl.Buffered(1)) if single_buffer_weights else {}
            in_specs = [
                pl.BlockSpec((tile_b, F0), lambda i: (i, 0)),              # x (pipelined)
                pl.BlockSpec((F0, H), lambda i: (0, 0), **wkw),            # w0 (resident)
                pl.BlockSpec((n_h_eff, H, H), lambda i: (0, 0, 0), **wkw),  # wh (resident)
                pl.BlockSpec((H, out_pad), lambda i: (0, 0), **wkw),       # wf (resident)
                pl.BlockSpec((n_hidden + 1, 1, H), lambda i: (0, 0, 0), **wkw),  # biases
                pl.BlockSpec((1, out_pad), lambda i: (0, 0), **wkw),       # final bias
            ]
            return pl.pallas_call(
                kernel,
                out_shape=jax.ShapeDtypeStruct((b_pad, out_pad), slab_dtype),
                grid=grid,
                in_specs=in_specs,
                out_specs=pl.BlockSpec((tile_b, out_pad), lambda i: (i, 0)),
                compiler_params=pltpu.CompilerParams(
                    dimension_semantics=("parallel",),
                    vmem_limit_bytes=self.vmem_budget,
                ),
            )(xc, self.w0, self.wh, self.wf, self.bh, self.bf)

        try:
            slab = launch(True)
        except Exception:
            # Fallback for JAX builds without BlockSpec(pipeline_mode=...):
            # default double-buffered weights (correctness unaffected).
            slab = launch(False)

        z_mean = slab[:B, :self.dim_z].astype(out_dtype)
        z_logvar = slab[:B, self.dim_z:2 * self.dim_z].astype(out_dtype)
        lam_mean = jnp.zeros((B, self.dim_z), out_dtype)
        lam_logvar = jnp.zeros((B, self.dim_z), out_dtype)
        return z_mean, z_logvar, lam_mean, lam_logvar


# ----------------------------------------------------------------------------
# Plain-JAX reference (module semantics)
# ----------------------------------------------------------------------------
def _reference_forward(enc, x, u, compute_dtype=None):
    """Reference. compute_dtype=None -> pure f32 (original module semantics);
    otherwise mimic the kernel's dtype discipline (cast matmul inputs)."""
    if enc.u_in_encoderx:
        x = jnp.concatenate([x, u], axis=-1)

    def mlp(params, h):
        h = h.astype(jnp.float32)
        for l in range(enc.n_layers_x + 1):
            w, b = params[2 * l], params[2 * l + 1]
            if compute_dtype is not None:
                h = h.astype(compute_dtype)
                w = w.astype(compute_dtype)
            h = jnp.dot(h, w, preferred_element_type=jnp.float32) + b
            if l < enc.n_layers_x:
                h = enc.act(h)
        return h

    zm = mlp(enc.mean_params, x)
    zl = mlp(enc.logvar_params, x)
    return zm, zl, jnp.zeros_like(zm), jnp.zeros_like(zl)


if __name__ == "__main__":
    # Small shapes consistent with the module's forward.
    B, dim_x, dim_u, gen_nodes_x, n_layers_x, dim_z = 8, 16, 4, 32, 2, 8

    key = jax.random.PRNGKey(0)
    kx, ku, kparams = jax.random.split(key, 3)
    x = jax.random.normal(kx, (B, dim_x), jnp.float32)
    u = jax.random.normal(ku, (B, dim_u), jnp.float32)

    # bf16 (default, perf path) and f32 encoders share identical params (same key).
    enc_bf16 = EncoderVAEPallas(dim_x, gen_nodes_x, n_layers_x, dim_u, dim_z,
                                u_in_encoderx=True, compute_dtype=jnp.bfloat16,
                                key=kparams)
    enc_f32 = EncoderVAEPallas(dim_x, gen_nodes_x, n_layers_x, dim_u, dim_z,
                               u_in_encoderx=True, compute_dtype=jnp.float32,
                               key=kparams)

    z_mean, z_logvar, lam_mean, lam_logvar = jax.block_until_ready(enc_bf16(x, u))
    z_mean32, z_logvar32, _, _ = jax.block_until_ready(enc_f32(x, u))

    # 1) bf16 kernel vs dtype-matched reference.
    rm_bf, rl_bf, _, _ = _reference_forward(enc_bf16, x, u, compute_dtype=jnp.bfloat16)
    assert jnp.allclose(z_mean, rm_bf, atol=5e-3, rtol=5e-3)
    assert jnp.allclose(z_logvar, rl_bf, atol=5e-3, rtol=5e-3)

    # 2) semantic check vs pure-f32 module reference.
    rm32, rl32, rlam_m, rlam_l = _reference_forward(enc_f32, x, u)
    assert jnp.allclose(z_mean, rm32, atol=5e-2, rtol=5e-2)
    assert jnp.allclose(z_logvar, rl32, atol=5e-2, rtol=5e-2)
    assert jnp.allclose(z_mean32, rm32, atol=2e-2, rtol=2e-2)
    assert jnp.allclose(z_logvar32, rl32, atol=2e-2, rtol=2e-2)

    # 3) lam outputs: exact zeros, correct shapes.
    assert z_mean.shape == (B, dim_z) and z_logvar.shape == (B, dim_z)
    assert lam_mean.shape == (B, dim_z) and lam_logvar.shape == (B, dim_z)
    assert jnp.all(lam_mean == 0) and jnp.all(lam_logvar == 0)

    # 4) single-hidden-layer config (exercises the n_hidden == 0 path).
    enc_1l = EncoderVAEPallas(dim_x, gen_nodes_x, 1, dim_u, dim_z,
                              u_in_encoderx=True, compute_dtype=jnp.bfloat16,
                              key=kparams)
    zm1, zl1, _, _ = jax.block_until_ready(enc_1l(x, u))
    rm1, rl1, _, _ = _reference_forward(enc_1l, x, u)
    assert jnp.allclose(zm1, rm1, atol=5e-2, rtol=5e-2)
    assert jnp.allclose(zl1, rl1, atol=5e-2, rtol=5e-2)

    print("KERNEL_OK")
</pallas_src>

<mosaic_0001>
module attributes {stable_mosaic.version = 11 : i64} {
  func.func @_fused_mlp_kernel(%arg0: i32, %arg1: memref<16x128xbf16, #tpu.memory_space<vmem>>, %arg2: memref<128x128xbf16, #tpu.memory_space<vmem>>, %arg3: memref<1x128x128xbf16, #tpu.memory_space<vmem>>, %arg4: memref<128x128xbf16, #tpu.memory_space<vmem>>, %arg5: memref<2x1x128xf32, #tpu.memory_space<vmem>>, %arg6: memref<1x128xf32, #tpu.memory_space<vmem>>, %arg7: memref<16x128xf32, #tpu.memory_space<vmem>>) attributes {dimension_semantics = [#tpu.dimension_semantics<parallel>], iteration_bounds = array<i64: 1>, scalar_prefetch = 0 : i64, scratch_operands = 0 : i64, tpu.core_type = #tpu.core_type<tc>, window_params = [{transform_indices = @transform_0, window_bounds = array<i64: 16, 128>}, {pipeline_mode = #tpu.pipeline_mode<synchronous>, transform_indices = @transform_1, window_bounds = array<i64: 128, 128>}, {pipeline_mode = #tpu.pipeline_mode<synchronous>, transform_indices = @transform_2, window_bounds = array<i64: 1, 128, 128>}, {pipeline_mode = #tpu.pipeline_mode<synchronous>, transform_indices = @transform_3, window_bounds = array<i64: 128, 128>}, {pipeline_mode = #tpu.pipeline_mode<synchronous>, transform_indices = @transform_4, window_bounds = array<i64: 2, 1, 128>}, {pipeline_mode = #tpu.pipeline_mode<synchronous>, transform_indices = @transform_5, window_bounds = array<i64: 1, 128>}, {transform_indices = @transform_6, window_bounds = array<i64: 16, 128>}]} {
    %c0 = arith.constant 0 : index
    %c0_0 = arith.constant 0 : index
    %0 = vector.load %arg1[%c0, %c0_0] : memref<16x128xbf16, #tpu.memory_space<vmem>>, vector<16x128xbf16>
    %c0_1 = arith.constant 0 : index
    %c0_2 = arith.constant 0 : index
    %1 = vector.load %arg2[%c0_1, %c0_2] : memref<128x128xbf16, #tpu.memory_space<vmem>>, vector<128x128xbf16>
    %cst = arith.constant dense<0.000000e+00> : vector<16x128xf32>
    %2 = tpu.matmul %0, %1, %cst {dimension_numbers = #tpu.dot_dimension_numbers<[1], [0], [0], [1], [0, 0, 1, 1], [], []>} : vector<16x128xbf16>, vector<128x128xbf16>, vector<16x128xf32> -> vector<16x128xf32>
    %c0_3 = arith.constant 0 : index
    %c0_4 = arith.constant 0 : index
    %c0_5 = arith.constant 0 : index
    %3 = vector.load %arg5[%c0_3, %c0_4, %c0_5] : memref<2x1x128xf32, #tpu.memory_space<vmem>>, vector<1x1x128xf32>
    %4 = vector.shape_cast %3 : vector<1x1x128xf32> to vector<1x128xf32>
    %5 = vector.broadcast %4 : vector<1x128xf32> to vector<16x128xf32>
    %6 = arith.addf %2, %5 : vector<16x128xf32>
    %7 = math.tanh %6 : vector<16x128xf32>
    %8 = arith.truncf %7 : vector<16x128xf32> to vector<16x128xbf16>
    %c0_6 = arith.constant 0 : index
    %c0_7 = arith.constant 0 : index
    %c0_8 = arith.constant 0 : index
    %9 = vector.load %arg3[%c0_6, %c0_7, %c0_8] : memref<1x128x128xbf16, #tpu.memory_space<vmem>>, vector<1x128x128xbf16>
    %10 = vector.shape_cast %9 : vector<1x128x128xbf16> to vector<128x128xbf16>
    %cst_9 = arith.constant dense<0.000000e+00> : vector<16x128xf32>
    %11 = tpu.matmul %8, %10, %cst_9 {dimension_numbers = #tpu.dot_dimension_numbers<[1], [0], [0], [1], [0, 0, 1, 1], [], []>} : vector<16x128xbf16>, vector<128x128xbf16>, vector<16x128xf32> -> vector<16x128xf32>
    %c1 = arith.constant 1 : index
    %c0_10 = arith.constant 0 : index
    %c0_11 = arith.constant 0 : index
    %12 = vector.load %arg5[%c1, %c0_10, %c0_11] : memref<2x1x128xf32, #tpu.memory_space<vmem>>, vector<1x1x128xf32>
    %13 = vector.shape_cast %12 : vector<1x1x128xf32> to vector<1x128xf32>
    %14 = vector.broadcast %13 : vector<1x128xf32> to vector<16x128xf32>
    %15 = arith.addf %11, %14 : vector<16x128xf32>
    %16 = math.tanh %15 : vector<16x128xf32>
    %17 = arith.truncf %16 : vector<16x128xf32> to vector<16x128xbf16>
    %c0_12 = arith.constant 0 : index
    %c0_13 = arith.constant 0 : index
    %18 = vector.load %arg4[%c0_12, %c0_13] : memref<128x128xbf16, #tpu.memory_space<vmem>>, vector<128x128xbf16>
    %cst_14 = arith.constant dense<0.000000e+00> : vector<16x128xf32>
    %19 = tpu.matmul %17, %18, %cst_14 {dimension_numbers = #tpu.dot_dimension_numbers<[1], [0], [0], [1], [0, 0, 1, 1], [], []>} : vector<16x128xbf16>, vector<128x128xbf16>, vector<16x128xf32> -> vector<16x128xf32>
    %c0_15 = arith.constant 0 : index
    %c0_16 = arith.constant 0 : index
    %20 = vector.load %arg6[%c0_15, %c0_16] : memref<1x128xf32, #tpu.memory_space<vmem>>, vector<1x128xf32>
    %21 = vector.broadcast %20 : vector<1x128xf32> to vector<16x128xf32>
    %22 = arith.addf %19, %21 : vector<16x128xf32>
    %c0_17 = arith.constant 0 : index
    %c0_18 = arith.constant 0 : index
    %23 = vector.load %arg7[%c0_17, %c0_18] : memref<16x128xf32, #tpu.memory_space<vmem>>, vector<16x128xf32>
    tpu.vector_store %arg7[%c0_17, %c0_18], %22 {strides = array<i32>} : memref<16x128xf32, #tpu.memory_space<vmem>>, vector<16x128xf32>,
    return
  }
  func.func @transform_0(%arg0: i32) -> (i32, i32) {
    %c0_i32 = arith.constant 0 : i32
    %c0_i32_0 = arith.constant 0 : i32
    return %arg0, %c0_i32 : i32, i32
  }
  func.func @transform_1(%arg0: i32) -> (i32, i32) {
    %c0_i32 = arith.constant 0 : i32
    %c0_i32_0 = arith.constant 0 : i32
    %c0_i32_1 = arith.constant 0 : i32
    return %c0_i32, %c0_i32_0 : i32, i32
  }
  func.func @transform_2(%arg0: i32) -> (i32, i32, i32) {
    %c0_i32 = arith.constant 0 : i32
    %c0_i32_0 = arith.constant 0 : i32
    %c0_i32_1 = arith.constant 0 : i32
    %c0_i32_2 = arith.constant 0 : i32
    return %c0_i32, %c0_i32_0, %c0_i32_1 : i32, i32, i32
  }
  func.func @transform_3(%arg0: i32) -> (i32, i32) {
    %c0_i32 = arith.constant 0 : i32
    %c0_i32_0 = arith.constant 0 : i32
    %c0_i32_1 = arith.constant 0 : i32
    return %c0_i32, %c0_i32_0 : i32, i32
  }
  func.func @transform_4(%arg0: i32) -> (i32, i32, i32) {
    %c0_i32 = arith.constant 0 : i32
    %c0_i32_0 = arith.constant 0 : i32
    %c0_i32_1 = arith.constant 0 : i32
    %c0_i32_2 = arith.constant 0 : i32
    return %c0_i32, %c0_i32_0, %c0_i32_1 : i32, i32, i32
  }
  func.func @transform_5(%arg0: i32) -> (i32, i32) {
    %c0_i32 = arith.constant 0 : i32
    %c0_i32_0 = arith.constant 0 : i32
    %c0_i32_1 = arith.constant 0 : i32
    return %c0_i32, %c0_i32_0 : i32, i32
  }
  func.func @transform_6(%arg0: i32) -> (i32, i32) {
    %c0_i32 = arith.constant 0 : i32
    %c0_i32_0 = arith.constant 0 : i32
    return %arg0, %c0_i32 : i32, i32
  }
}

module attributes {stable_mosaic.version = 11 : i64} {
  func.func @_fused_mlp_kernel(%arg0: i32, %arg1: memref<16x128xbf16, #tpu.memory_space<vmem>>, %arg2: memref<128x128xbf16, #tpu.memory_space<vmem>>, %arg3: memref<1x128x128xbf16, #tpu.memory_space<vmem>>, %arg4: memref<128x128xbf16, #tpu.memory_space<vmem>>, %arg5: memref<2x1x128xf32, #tpu.memory_space<vmem>>, %arg6: memref<1x128xf32, #tpu.memory_space<vmem>>, %arg7: memref<16x128xf32, #tpu.memory_space<vmem>>) attributes {dimension_semantics = [#tpu.dimension_semantics<parallel>], iteration_bounds = array<i64: 1>, scalar_prefetch = 0 : i64, scratch_operands = 0 : i64, tpu.core_type = #tpu.core_type<tc>, window_params = [{transform_indices = @transform_0, window_bounds = array<i64: 16, 128>}, {pipeline_mode = #tpu.pipeline_mode<synchronous>, transform_indices = @transform_1, window_bounds = array<i64: 128, 128>}, {pipeline_mode = #tpu.pipeline_mode<synchronous>, transform_indices = @transform_2, window_bounds = array<i64: 1, 128, 128>}, {pipeline_mode = #tpu.pipeline_mode<synchronous>, transform_indices = @transform_3, window_bounds = array<i64: 128, 128>}, {pipeline_mode = #tpu.pipeline_mode<synchronous>, transform_indices = @transform_4, window_bounds = array<i64: 2, 1, 128>}, {pipeline_mode = #tpu.pipeline_mode<synchronous>, transform_indices = @transform_5, window_bounds = array<i64: 1, 128>}, {transform_indices = @transform_6, window_bounds = array<i64: 16, 128>}]} {
    %c0 = arith.constant 0 : index
    %c0_0 = arith.constant 0 : index
    %0 = vector.load %arg1[%c0, %c0_0] : memref<16x128xbf16, #tpu.memory_space<vmem>>, vector<16x128xbf16>
    %c0_1 = arith.constant 0 : index
    %c0_2 = arith.constant 0 : index
    %1 = vector.load %arg2[%c0_1, %c0_2] : memref<128x128xbf16, #tpu.memory_space<vmem>>, vector<128x128xbf16>
    %cst = arith.constant dense<0.000000e+00> : vector<16x128xf32>
    %2 = tpu.matmul %0, %1, %cst {dimension_numbers = #tpu.dot_dimension_numbers<[1], [0], [0], [1], [0, 0, 1, 1], [], []>} : vector<16x128xbf16>, vector<128x128xbf16>, vector<16x128xf32> -> vector<16x128xf32>
    %c0_3 = arith.constant 0 : index
    %c0_4 = arith.constant 0 : index
    %c0_5 = arith.constant 0 : index
    %3 = vector.load %arg5[%c0_3, %c0_4, %c0_5] : memref<2x1x128xf32, #tpu.memory_space<vmem>>, vector<1x1x128xf32>
    %4 = vector.shape_cast %3 : vector<1x1x128xf32> to vector<1x128xf32>
    %5 = vector.broadcast %4 : vector<1x128xf32> to vector<16x128xf32>
    %6 = arith.addf %2, %5 : vector<16x128xf32>
    %7 = math.tanh %6 : vector<16x128xf32>
    %8 = arith.truncf %7 : vector<16x128xf32> to vector<16x128xbf16>
    %c0_6 = arith.constant 0 : index
    %c0_7 = arith.constant 0 : index
    %c0_8 = arith.constant 0 : index
    %9 = vector.load %arg3[%c0_6, %c0_7, %c0_8] : memref<1x128x128xbf16, #tpu.memory_space<vmem>>, vector<1x128x128xbf16>
    %10 = vector.shape_cast %9 : vector<1x128x128xbf16> to vector<128x128xbf16>
    %cst_9 = arith.constant dense<0.000000e+00> : vector<16x128xf32>
    %11 = tpu.matmul %8, %10, %cst_9 {dimension_numbers = #tpu.dot_dimension_numbers<[1], [0], [0], [1], [0, 0, 1, 1], [], []>} : vector<16x128xbf16>, vector<128x128xbf16>, vector<16x128xf32> -> vector<16x128xf32>
    %c1 = arith.constant 1 : index
    %c0_10 = arith.constant 0 : index
    %c0_11 = arith.constant 0 : index
    %12 = vector.load %arg5[%c1, %c0_10, %c0_11] : memref<2x1x128xf32, #tpu.memory_space<vmem>>, vector<1x1x128xf32>
    %13 = vector.shape_cast %12 : vector<1x1x128xf32> to vector<1x128xf32>
    %14 = vector.broadcast %13 : vector<1x128xf32> to vector<16x128xf32>
    %15 = arith.addf %11, %14 : vector<16x128xf32>
    %16 = math.tanh %15 : vector<16x128xf32>
    %17 = arith.truncf %16 : vector<16x128xf32> to vector<16x128xbf16>
    %c0_12 = arith.constant 0 : index
    %c0_13 = arith.constant 0 : index
    %18 = vector.load %arg4[%c0_12, %c0_13] : memref<128x128xbf16, #tpu.memory_space<vmem>>, vector<128x128xbf16>
    %cst_14 = arith.constant dense<0.000000e+00> : vector<16x128xf32>
    %19 = tpu.matmul %17, %18, %cst_14 {dimension_numbers = #tpu.dot_dimension_numbers<[1], [0], [0], [1], [0, 0, 1, 1], [], []>} : vector<16x128xbf16>, vector<128x128xbf16>, vector<16x128xf32> -> vector<16x128xf32>
    %c0_15 = arith.constant 0 : index
    %c0_16 = arith.constant 0 : index
    %20 = vector.load %arg6[%c0_15, %c0_16] : memref<1x128xf32, #tpu.memory_space<vmem>>, vector<1x128xf32>
    %21 = vector.broadcast %20 : vector<1x128xf32> to vector<16x128xf32>
    %22 = arith.addf %19, %21 : vector<16x128xf32>
    %c0_17 = arith.constant 0 : index
    %c0_18 = arith.constant 0 : index
    %23 = vector.load %arg7[%c0_17, %c0_18] : memref<16x128xf32, #tpu.memory_space<vmem>>, vector<16x128xf32>
    tpu.vector_store %arg7[%c0_17, %c0_18], %22 {strides = array<i32>} : memref<16x128xf32, #tpu.memory_space<vmem>>, vector<16x128xf32>,
    return
  }
  func.func @transform_0(%arg0: i32) -> (i32, i32) {
    %c0_i32 = arith.constant 0 : i32
    %c0_i32_0 = arith.constant 0 : i32
    return %arg0, %c0_i32 : i32, i32
  }
  func.func @transform_1(%arg0: i32) -> (i32, i32) {
    %c0_i32 = arith.constant 0 : i32
    %c0_i32_0 = arith.constant 0 : i32
    %c0_i32_1 = arith.constant 0 : i32
    return %c0_i32, %c0_i32_0 : i32, i32
  }
  func.func @transform_2(%arg0: i32) -> (i32, i32, i32) {
    %c0_i32 = arith.constant 0 : i32
    %c0_i32_0 = arith.constant 0 : i32
    %c0_i32_1 = arith.constant 0 : i32
    %c0_i32_2 = arith.constant 0 : i32
    return %c0_i32, %c0_i32_0, %c0_i32_1 : i32, i32, i32
  }
  func.func @transform_3(%arg0: i32) -> (i32, i32) {
    %c0_i32 = arith.constant 0 : i32
    %c0_i32_0 = arith.constant 0 : i32
    %c0_i32_1 = arith.constant 0 : i32
    return %c0_i32, %c0_i32_0 : i32, i32
  }
  func.func @transform_4(%arg0: i32) -> (i32, i32, i32) {
    %c0_i32 = arith.constant 0 : i32
    %c0_i32_0 = arith.constant 0 : i32
    %c0_i32_1 = arith.constant 0 : i32
    %c0_i32_2 = arith.constant 0 : i32
    return %c0_i32, %c0_i32_0, %c0_i32_1 : i32, i32, i32
  }
  func.func @transform_5(%arg0: i32) -> (i32, i32) {
    %c0_i32 = arith.constant 0 : i32
    %c0_i32_0 = arith.constant 0 : i32
    %c0_i32_1 = arith.constant 0 : i32
    return %c0_i32, %c0_i32_0 : i32, i32
  }
  func.func @transform_6(%arg0: i32) -> (i32, i32) {
    %c0_i32 = arith.constant 0 : i32
    %c0_i32_0 = arith.constant 0 : i32
    return %arg0, %c0_i32 : i32, i32
  }
}

</mosaic_0001>

<llo_original>
// kernel: tpu_custom_call.1
$region0: #{tpu_custom_call.1}
  #allocation0 [shape = 'u32[]', space=smem, size = 0x4, offset = 0x4, fixed_abs, tag = 'smem constant byte address 0x4 - core index']
  #allocation1 [shape = 'u32[144,128]{1,0:T(1,128)}', space=vmem, size = 0x12000, scoped, tag = 'internal scratch']
  %s0 = inlined_call_operand.hbm [shape: bf16[16,128], index: 0, kind: input, shape index: {}]
  %s1 = inlined_call_operand.hbm [shape: bf16[128,128], index: 1, kind: input, shape index: {}]
  %s2 = inlined_call_operand.hbm [shape: bf16[1,128,128], index: 2, kind: input, shape index: {}]
  %s3 = inlined_call_operand.hbm [shape: bf16[128,128], index: 3, kind: input, shape index: {}]
  %s4 = inlined_call_operand.vmem [shape: f32[2,1,128], index: 4, kind: input, shape index: {}]
  %s5 = inlined_call_operand.vmem [shape: f32[1,128], index: 5, kind: input, shape index: {}]
  %s6 = inlined_call_operand.hbm [shape: f32[16,128], index: 6, kind: output, shape index: {}]
  %s7 = sld [smem:[#allocation0]]
  $region50: #{tpu_custom_call.1} parent=0
    _
  %s9 = ssub.s32 1, %s7
  %s10 = scalar_select 0, %s9, %s7
  $region1: #{tpu_custom_call.1} parent=0
    #allocation2 [shape = 'u8[4096]{0}', space=vmem, size = 0x1000, scoped, tag = 'input window, operand 0, single buffered']
    #allocation3 [shape = 's32[1]{0}', space=sflag, size = 0x4, scoped, tag = 'scoped memory for tpu_custom_call.1']
    #allocation4 [shape = 's32[1]{0}', space=sflag, size = 0x4, scoped, tag = 'scoped memory for tpu_custom_call.1']
    #allocation5 [shape = 'u8[32768]{0}', space=vmem, size = 0x8000, scoped, tag = 'input window, operand 1, single buffered']
    #allocation6 [shape = 's32[1]{0}', space=sflag, size = 0x4, scoped, tag = 'scoped memory for tpu_custom_call.1']
    #allocation7 [shape = 'u8[32768]{0}', space=vmem, size = 0x8000, scoped, tag = 'input window, operand 2, single buffered']
    #allocation8 [shape = 'u8[32768]{0}', space=vmem, size = 0x8000, scoped, tag = 'input window, operand 3, single buffered']
    #allocation9 [shape = 's32[1]{0}', space=sflag, size = 0x4, scoped, tag = 'scoped memory for tpu_custom_call.1']
    #allocation10 [shape = 'u8[8192]{0}', space=vmem, size = 0x2000, scoped, tag = 'output window, operand 0, single buffered']
    %11 = vsyncpa [#allocation3], 0
    %12 = vsyncpa [#allocation6], 0
    %13 = vsyncpa [#allocation9], 0
    %14 = vsyncpa [#allocation4], 0
    // Predicated region
    $region2: #{tpu_custom_call.1} parent=1 // pred_check
      _
    $region3: #{tpu_custom_call.1} parent=1 // pred_check_branch
      %16 = sbr.rel (0) target = $region5
    $region4: #{tpu_custom_call.1} parent=1 // pred_region
      %s18 = ssub.s32 128, 128
      %19 = vsyncadd [#allocation3], %s18
      %s20 = sshll.u32 [#allocation2], 4
      %s21 = int_to_ptr.vmem [resolvable:$true] %s20
      %26 = dma.hbm_to_vmem [thread:$0]  %s0, 128, %s21, [#allocation3], 64, 64, 4
    $region5: #{tpu_custom_call.1} parent=1 // pred_fallthru
      _
    // Predicated region
    $region6: #{tpu_custom_call.1} parent=1 // pred_check
      _
    $region7: #{tpu_custom_call.1} parent=1 // pred_check_branch
      %28 = sbr.rel (0) target = $region9
    $region8: #{tpu_custom_call.1} parent=1 // pred_region
      %s30 = ssub.s32 1024, 1024
      %31 = vsyncadd [#allocation6], %s30
      %s32 = sshll.u32 [#allocation5], 4
      %s33 = int_to_ptr.vmem [resolvable:$true] %s32
      %38 = dma.hbm_to_vmem [thread:$0]  %s1, 1024, %s33, [#allocation6], 64, 64, 4
    $region9: #{tpu_custom_call.1} parent=1 // pred_fallthru
      _
    // Predicated region
    $region10: #{tpu_custom_call.1} parent=1 // pred_check
      _
    $region11: #{tpu_custom_call.1} parent=1 // pred_check_branch
      %40 = sbr.rel (0) target = $region13
    $region12: #{tpu_custom_call.1} parent=1 // pred_region
      %s42 = ssub.s32 1024, 1024
      %43 = vsyncadd [#allocation6], %s42
      %s44 = sshll.u32 [#allocation7], 4
      %s45 = int_to_ptr.vmem [resolvable:$true] %s44
      %50 = dma.hbm_to_vmem [thread:$0]  %s2, 1024, %s45, [#allocation6], 64, 64, 4
    $region13: #{tpu_custom_call.1} parent=1 // pred_fallthru
      _
    // Predicated region
    $region14: #{tpu_custom_call.1} parent=1 // pred_check
      _
    $region15: #{tpu_custom_call.1} parent=1 // pred_check_branch
      %52 = sbr.rel (0) target = $region17
    $region16: #{tpu_custom_call.1} parent=1 // pred_region
      %s54 = ssub.s32 1024, 1024
      %55 = vsyncadd [#allocation9], %s54
      %s56 = sshll.u32 [#allocation8], 4
      %s57 = int_to_ptr.vmem [resolvable:$true] %s56
      %62 = dma.hbm_to_vmem [thread:$0]  %s3, 1024, %s57, [#allocation9], 64, 64, 4
    $region17: #{tpu_custom_call.1} parent=1 // pred_fallthru
      _
    // Predicated region
    $region18: #{tpu_custom_call.1} parent=1 // pred_check
      _
    $region19: #{tpu_custom_call.1} parent=1 // pred_check_branch
      %64 = sbr.rel (0) target = $region21
    $region20: #{tpu_custom_call.1} parent=1 // pred_region
      _
    $region21: #{tpu_custom_call.1} parent=1 // pred_fallthru
      _
    // Predicated region
    $region22: #{tpu_custom_call.1} parent=1 // pred_check
      _
    $region23: #{tpu_custom_call.1} parent=1 // pred_check_branch
      %66 = sbr.rel (0) target = $region25
    $region24: #{tpu_custom_call.1} parent=1 // pred_region
      _
    $region25: #{tpu_custom_call.1} parent=1 // pred_fallthru
      _
    // Predicated region
    $region26: #{tpu_custom_call.1} parent=1 // pred_check
      _
    $region27: #{tpu_custom_call.1} parent=1 // pred_check_branch
      %68 = sbr.rel (0) target = $region29
    $region28: #{tpu_custom_call.1} parent=1 // pred_region
      %69 = dma.done [#allocation3], 128
    $region29: #{tpu_custom_call.1} parent=1 // pred_fallthru
      _
    // Predicated region
    $region30: #{tpu_custom_call.1} parent=1 // pred_check
      _
    $region31: #{tpu_custom_call.1} parent=1 // pred_check_branch
      %71 = sbr.rel (0) target = $region33
    $region32: #{tpu_custom_call.1} parent=1 // pred_region
      %72 = dma.done [#allocation6], 1024
    $region33: #{tpu_custom_call.1} parent=1 // pred_fallthru
      _
    // Predicated region
    $region34: #{tpu_custom_call.1} parent=1 // pred_check
      _
    $region35: #{tpu_custom_call.1} parent=1 // pred_check_branch
      %74 = sbr.rel (0) target = $region37
    $region36: #{tpu_custom_call.1} parent=1 // pred_region
      %75 = dma.done [#allocation6], 1024
    $region37: #{tpu_custom_call.1} parent=1 // pred_fallthru
      _
    // Predicated region
    $region38: #{tpu_custom_call.1} parent=1 // pred_check
      _
    $region39: #{tpu_custom_call.1} parent=1 // pred_check_branch
      %77 = sbr.rel (0) target = $region41
    $region40: #{tpu_custom_call.1} parent=1 // pred_region
      %78 = dma.done [#allocation9], 1024
    $region41: #{tpu_custom_call.1} parent=1 // pred_fallthru
      _
    %v80 = vld [vmem:[#allocation2] sm:$0xf]
    %v81 = vld [vmem:[#allocation2 + $0x4] sm:$0xf]
    %v82 = vld [vmem:[#allocation5] sm:$0xf]
    %v83 = vld [vmem:[#allocation5 + $0x4] sm:$0xf]
    %v84 = vld [vmem:[#allocation5 + $0x8] sm:$0xf]
    %v85 = vld [vmem:[#allocation5 + $0xc] sm:$0xf]
    %v86 = vld [vmem:[#allocation5 + $0x10] sm:$0xf]
    %v87 = vld [vmem:[#allocation5 + $0x14] sm:$0xf]
    %v88 = vld [vmem:[#allocation5 + $0x18] sm:$0xf]
    %v89 = vld [vmem:[#allocation5 + $0x1c] sm:$0xf]
    %v90 = vld [vmem:[#allocation5 + $0x20] sm:$0xf]
    %v91 = vld [vmem:[#allocation5 + $0x24] sm:$0xf]
    %v92 = vld [vmem:[#allocation5 + $0x28] sm:$0xf]
    %v93 = vld [vmem:[#allocation5 + $0x2c] sm:$0xf]
    %v94 = vld [vmem:[#allocation5 + $0x30] sm:$0xf]
    %v95 = vld [vmem:[#allocation5 + $0x34] sm:$0xf]
    %v96 = vld [vmem:[#allocation5 + $0x38] sm:$0xf]
    %v97 = vld [vmem:[#allocation5 + $0x3c] sm:$0xf]
    %v98 = vld [vmem:[%s4] sm:$0x1]
    %v100 = vlaneseq
    %v101 = vshrl.u32 %v100, 7
    %v102 = vsub.s32 0, %v101
    %v103 = vrot.slane %v98, %v102
    %v107 = vunpack.c.l.b16 %v80
    %v108 = vunpack.c.l.b16 %v81
    %v109 = vpack.c.b16 %v108, %v107
    %v127 = vunpack.c.l.b16 %v82
    %v128 = vunpack.c.l.b16 %v83
    %v129 = vunpack.c.l.b16 %v84
    %v130 = vunpack.c.l.b16 %v85
    %v131 = vunpack.c.l.b16 %v86
    %v132 = vunpack.c.l.b16 %v87
    %v133 = vunpack.c.l.b16 %v88
    %v134 = vunpack.c.l.b16 %v89
    %v135 = vunpack.c.l.b16 %v90
    %v136 = vunpack.c.l.b16 %v91
    %v137 = vunpack.c.l.b16 %v92
    %v138 = vunpack.c.l.b16 %v93
    %v139 = vunpack.c.l.b16 %v94
    %v140 = vunpack.c.l.b16 %v95
    %v141 = vunpack.c.l.b16 %v96
    %v142 = vunpack.c.l.b16 %v97
    %v143 = vpack.c.b16 %v128, %v127
    %v144 = vpack.c.b16 %v130, %v129
    %v145 = vpack.c.b16 %v132, %v131
    %v146 = vpack.c.b16 %v134, %v133
    %v147 = vpack.c.b16 %v136, %v135
    %v148 = vpack.c.b16 %v138, %v137
    %v149 = vpack.c.b16 %v140, %v139
    %v150 = vpack.c.b16 %v142, %v141
    %159 = vmatprep.subr.bf16.mxu0 0
    %160 = vmatpush1.bf16.msra.mxu0 %v150
    %161 = vmatprep.subr.bf16.mxu0 0
    %162 = vmatpush1.bf16.msra.mxu0 %v149
    %163 = vmatprep.subr.bf16.mxu0 0
    %164 = vmatpush1.bf16.msra.mxu0 %v148
    %165 = vmatprep.subr.bf16.mxu0 0
    %166 = vmatpush1.bf16.msra.mxu0 %v147
    %167 = vmatprep.subr.bf16.mxu0 0
    %168 = vmatpush1.bf16.msra.mxu0 %v146
    %169 = vmatprep.subr.bf16.mxu0 0
    %170 = vmatpush1.bf16.msra.mxu0 %v145
    %171 = vmatprep.subr.bf16.mxu0 0
    %172 = vmatpush1.bf16.msra.mxu0 %v144
    %173 = vmatprep.subr.bf16.mxu0 0
    %174 = vmatpush1.bf16.msra.mxu0 %v143
    %175 = vmatprep.subr.bf16.mxu0 0
    %176 = vmatpush2.bf16.msra.mxu0 0
    %177 = vmatprep.subr.bf16.mxu0 0
    %178 = vmatpush2.bf16.msra.mxu0 0
    %179 = vmatprep.subr.bf16.mxu0 0
    %180 = vmatpush2.bf16.msra.mxu0 0
    %181 = vmatprep.subr.bf16.mxu0 0
    %182 = vmatpush2.bf16.msra.mxu0 0
    %183 = vmatprep.subr.bf16.mxu0 0
    %184 = vmatpush2.bf16.msra.mxu0 0
    %185 = vmatprep.subr.bf16.mxu0 0
    %186 = vmatpush2.bf16.msra.mxu0 0
    %187 = vmatprep.subr.bf16.mxu0 0
    %188 = vmatpush2.bf16.msra.mxu0 0
    %189 = vmatprep.subr.bf16.mxu0 0
    %190 = vmatpush2.bf16.msra.mxu0 0
    %191 = vmatprep.mubr.bf16.mxu0 0
    %192 = vmatmul.mubr.bf16.gmra.mxu0 %v109
    %v193 = vpop.f32.mrf.mxu0
    %v194 = vadd.f32 %v103, %v193
    %v195 = vpop.f32.mrf.mxu0
    %v196 = vpop.f32.mrf.mxu0
    %v197 = vadd.f32 %v103, %v196
    %v198 = vpop.f32.mrf.mxu0
    %199 = vdwg.mxu0
    %v200 = vtanh.pop %v194
    %v201 = vtanh.pop %v197
    %v202 = vpack.c.bf16 %v201, %v200
    %v203 = vld [vmem:[#allocation7] sm:$0xf]
    %v204 = vld [vmem:[#allocation7 + $0x4] sm:$0xf]
    %v205 = vld [vmem:[#allocation7 + $0x8] sm:$0xf]
    %v206 = vld [vmem:[#allocation7 + $0xc] sm:$0xf]
    %v207 = vld [vmem:[#allocation7 + $0x10] sm:$0xf]
    %v208 = vld [vmem:[#allocation7 + $0x14] sm:$0xf]
    %v209 = vld [vmem:[#allocation7 + $0x18] sm:$0xf]
    %v210 = vld [vmem:[#allocation7 + $0x1c] sm:$0xf]
    %v211 = vld [vmem:[#allocation7 + $0x20] sm:$0xf]
    %v212 = vld [vmem:[#allocation7 + $0x24] sm:$0xf]
    %v213 = vld [vmem:[#allocation7 + $0x28] sm:$0xf]
    %v214 = vld [vmem:[#allocation7 + $0x2c] sm:$0xf]
    %v215 = vld [vmem:[#allocation7 + $0x30] sm:$0xf]
    %v216 = vld [vmem:[#allocation7 + $0x34] sm:$0xf]
    %v217 = vld [vmem:[#allocation7 + $0x38] sm:$0xf]
    %v218 = vld [vmem:[#allocation7 + $0x3c] sm:$0xf]
    %s219 = scalar_lea.vmem %s4, 1
    %v220 = vld [vmem:[%s219] sm:$0x1]
    %v222 = vlaneseq
    %v223 = vshrl.u32 %v222, 7
    %v224 = vsub.s32 0, %v223
    %v225 = vrot.slane %v220, %v224
    %v243 = vunpack.c.l.b16 %v203
    %v244 = vunpack.c.l.b16 %v204
    %v245 = vunpack.c.l.b16 %v205
    %v246 = vunpack.c.l.b16 %v206
    %v247 = vunpack.c.l.b16 %v207
    %v248 = vunpack.c.l.b16 %v208
    %v249 = vunpack.c.l.b16 %v209
    %v250 = vunpack.c.l.b16 %v210
    %v251 = vunpack.c.l.b16 %v211
    %v252 = vunpack.c.l.b16 %v212
    %v253 = vunpack.c.l.b16 %v213
    %v254 = vunpack.c.l.b16 %v214
    %v255 = vunpack.c.l.b16 %v215
    %v256 = vunpack.c.l.b16 %v216
    %v257 = vunpack.c.l.b16 %v217
    %v258 = vunpack.c.l.b16 %v218
    %v259 = vpack.c.b16 %v244, %v243
    %v260 = vpack.c.b16 %v246, %v245
    %v261 = vpack.c.b16 %v248, %v247
    %v262 = vpack.c.b16 %v250, %v249
    %v263 = vpack.c.b16 %v252, %v251
    %v264 = vpack.c.b16 %v254, %v253
    %v265 = vpack.c.b16 %v256, %v255
    %v266 = vpack.c.b16 %v258, %v257
    %275 = vmatprep.subr.bf16.mxu0 0
    %276 = vmatpush1.bf16.msra.mxu0 %v266
    %277 = vmatprep.subr.bf16.mxu0 0
    %278 = vmatpush1.bf16.msra.mxu0 %v265
    %279 = vmatprep.subr.bf16.mxu0 0
    %280 = vmatpush1.bf16.msra.mxu0 %v264
    %281 = vmatprep.subr.bf16.mxu0 0
    %282 = vmatpush1.bf16.msra.mxu0 %v263
    %283 = vmatprep.subr.bf16.mxu0 0
    %284 = vmatpush1.bf16.msra.mxu0 %v262
    %285 = vmatprep.subr.bf16.mxu0 0
    %286 = vmatpush1.bf16.msra.mxu0 %v261
    %287 = vmatprep.subr.bf16.mxu0 0
    %288 = vmatpush1.bf16.msra.mxu0 %v260
    %289 = vmatprep.subr.bf16.mxu0 0
    %290 = vmatpush1.bf16.msra.mxu0 %v259
    %291 = vmatprep.subr.bf16.mxu0 0
    %292 = vmatpush2.bf16.msra.mxu0 0
    %293 = vmatprep.subr.bf16.mxu0 0
    %294 = vmatpush2.bf16.msra.mxu0 0
    %295 = vmatprep.subr.bf16.mxu0 0
    %296 = vmatpush2.bf16.msra.mxu0 0
    %297 = vmatprep.subr.bf16.mxu0 0
    %298 = vmatpush2.bf16.msra.mxu0 0
    %299 = vmatprep.subr.bf16.mxu0 0
    %300 = vmatpush2.bf16.msra.mxu0 0
    %301 = vmatprep.subr.bf16.mxu0 0
    %302 = vmatpush2.bf16.msra.mxu0 0
    %303 = vmatprep.subr.bf16.mxu0 0
    %304 = vmatpush2.bf16.msra.mxu0 0
    %305 = vmatprep.subr.bf16.mxu0 0
    %306 = vmatpush2.bf16.msra.mxu0 0
    %307 = vmatprep.mubr.bf16.mxu0 0
    %308 = vmatmul.mubr.bf16.gmra.mxu0 %v202
    %v309 = vpop.f32.mrf.mxu0
    %v310 = vadd.f32 %v225, %v309
    %v311 = vpop.f32.mrf.mxu0
    %v312 = vpop.f32.mrf.mxu0
    %v313 = vadd.f32 %v225, %v312
    %v314 = vpop.f32.mrf.mxu0
    %315 = vdwg.mxu0
    %v316 = vtanh.pop %v310
    %v317 = vtanh.pop %v313
    %v318 = vpack.c.bf16 %v317, %v316
    %v319 = vld [vmem:[#allocation8] sm:$0xf]
    %v320 = vld [vmem:[#allocation8 + $0x4] sm:$0xf]
    %v321 = vld [vmem:[#allocation8 + $0x8] sm:$0xf]
    %v322 = vld [vmem:[#allocation8 + $0xc] sm:$0xf]
    %v323 = vld [vmem:[#allocation8 + $0x10] sm:$0xf]
    %v324 = vld [vmem:[#allocation8 + $0x14] sm:$0xf]
    %v325 = vld [vmem:[#allocation8 + $0x18] sm:$0xf]
    %v326 = vld [vmem:[#allocation8 + $0x1c] sm:$0xf]
    %v327 = vld [vmem:[#allocation8 + $0x20] sm:$0xf]
    %v328 = vld [vmem:[#allocation8 + $0x24] sm:$0xf]
    %v329 = vld [vmem:[#allocation8 + $0x28] sm:$0xf]
    %v330 = vld [vmem:[#allocation8 + $0x2c] sm:$0xf]
    %v331 = vld [vmem:[#allocation8 + $0x30] sm:$0xf]
    %v332 = vld [vmem:[#allocation8 + $0x34] sm:$0xf]
    %v333 = vld [vmem:[#allocation8 + $0x38] sm:$0xf]
    %v334 = vld [vmem:[#allocation8 + $0x3c] sm:$0xf]
    %v335 = vld [vmem:[%s5] sm:$0x1]
    %v337 = vlaneseq
    %v338 = vshrl.u32 %v337, 7
    %v339 = vsub.s32 0, %v338
    %v340 = vrot.slane %v335, %v339
    %v358 = vunpack.c.l.b16 %v319
    %v359 = vunpack.c.l.b16 %v320
    %v360 = vunpack.c.l.b16 %v321
    %v361 = vunpack.c.l.b16 %v322
    %v362 = vunpack.c.l.b16 %v323
    %v363 = vunpack.c.l.b16 %v324
    %v364 = vunpack.c.l.b16 %v325
    %v365 = vunpack.c.l.b16 %v326
    %v366 = vunpack.c.l.b16 %v327
    %v367 = vunpack.c.l.b16 %v328
    %v368 = vunpack.c.l.b16 %v329
    %v369 = vunpack.c.l.b16 %v330
    %v370 = vunpack.c.l.b16 %v331
    %v371 = vunpack.c.l.b16 %v332
    %v372 = vunpack.c.l.b16 %v333
    %v373 = vunpack.c.l.b16 %v334
    %v374 = vpack.c.b16 %v359, %v358
    %v375 = vpack.c.b16 %v361, %v360
    %v376 = vpack.c.b16 %v363, %v362
    %v377 = vpack.c.b16 %v365, %v364
    %v378 = vpack.c.b16 %v367, %v366
    %v379 = vpack.c.b16 %v369, %v368
    %v380 = vpack.c.b16 %v371, %v370
    %v381 = vpack.c.b16 %v373, %v372
    %390 = vmatprep.subr.bf16.mxu0 0
    %391 = vmatpush1.bf16.msra.mxu0 %v381
    %392 = vmatprep.subr.bf16.mxu0 0
    %393 = vmatpush1.bf16.msra.mxu0 %v380
    %394 = vmatprep.subr.bf16.mxu0 0
    %395 = vmatpush1.bf16.msra.mxu0 %v379
    %396 = vmatprep.subr.bf16.mxu0 0
    %397 = vmatpush1.bf16.msra.mxu0 %v378
    %398 = vmatprep.subr.bf16.mxu0 0
    %399 = vmatpush1.bf16.msra.mxu0 %v377
    %400 = vmatprep.subr.bf16.mxu0 0
    %401 = vmatpush1.bf16.msra.mxu0 %v376
    %402 = vmatprep.subr.bf16.mxu0 0
    %403 = vmatpush1.bf16.msra.mxu0 %v375
    %404 = vmatprep.subr.bf16.mxu0 0
    %405 = vmatpush1.bf16.msra.mxu0 %v374
    %406 = vmatprep.subr.bf16.mxu0 0
    %407 = vmatpush2.bf16.msra.mxu0 0
    %408 = vmatprep.subr.bf16.mxu0 0
    %409 = vmatpush2.bf16.msra.mxu0 0
    %410 = vmatprep.subr.bf16.mxu0 0
    %411 = vmatpush2.bf16.msra.mxu0 0
    %412 = vmatprep.subr.bf16.mxu0 0
    %413 = vmatpush2.bf16.msra.mxu0 0
    %414 = vmatprep.subr.bf16.mxu0 0
    %415 = vmatpush2.bf16.msra.mxu0 0
    %416 = vmatprep.subr.bf16.mxu0 0
    %417 = vmatpush2.bf16.msra.mxu0 0
    %418 = vmatprep.subr.bf16.mxu0 0
    %419 = vmatpush2.bf16.msra.mxu0 0
    %420 = vmatprep.subr.bf16.mxu0 0
    %421 = vmatpush2.bf16.msra.mxu0 0
    %422 = vmatprep.mubr.bf16.mxu0 0
    %423 = vmatmul.mubr.bf16.gmra.mxu0 %v318
    %v424 = vpop.f32.mrf.mxu0
    %v425 = vadd.f32 %v340, %v424
    %v426 = vpop.f32.mrf.mxu0
    %v427 = vpop.f32.mrf.mxu0
    %v428 = vadd.f32 %v340, %v427
    %v429 = vpop.f32.mrf.mxu0
    %430 = vdwg.mxu0
    %431 = vst [vmem:[#allocation10] sm:$0xff] %v425
    %432 = vst [vmem:[#allocation10 + $0x8] sm:$0xff] %v428
    // Predicated region
    $region42: #{tpu_custom_call.1} parent=1 // pred_check
      _
    $region43: #{tpu_custom_call.1} parent=1 // pred_check_branch
      %434 = sbr.rel (0) target = $region45
    $region44: #{tpu_custom_call.1} parent=1 // pred_region
      %s436 = ssub.s32 256, 256
      %437 = vsyncadd [#allocation4], %s436
      %s438 = sshll.u32 [#allocation10], 4
      %s439 = int_to_ptr.vmem [resolvable:$true] %s438
      %444 = dma.vmem_to_hbm [thread:$0]  %s439, 256, %s6, [#allocation4], 128, 128, 8
    $region45: #{tpu_custom_call.1} parent=1 // pred_fallthru
      _
    // Predicated region
    $region46: #{tpu_custom_call.1} parent=1 // pred_check
      _
    $region47: #{tpu_custom_call.1} parent=1 // pred_check_branch
      %446 = sbr.rel (0) target = $region49
    $region48: #{tpu_custom_call.1} parent=1 // pred_region
      %447 = dma.done [#allocation4], 256
    $region49: #{tpu_custom_call.1} parent=1 // pred_fallthru
      _
    %448 = vsyncpa [#allocation3], 1
    %449 = vsyncpa [#allocation6], 1
    %450 = vsyncpa [#allocation9], 1
    %451 = vsyncpa [#allocation4], 1

// kernel: tpu_custom_call.1
$region0: #{tpu_custom_call.1}
  #allocation0 [shape = 'u32[]', space=smem, size = 0x4, offset = 0x4, fixed_abs, tag = 'smem constant byte address 0x4 - core index']
  #allocation1 [shape = 'u32[144,128]{1,0:T(1,128)}', space=vmem, size = 0x12000, scoped, tag = 'internal scratch']
  %s0 = inlined_call_operand.hbm [shape: bf16[16,128], index: 0, kind: input, shape index: {}]
  %s1 = inlined_call_operand.hbm [shape: bf16[128,128], index: 1, kind: input, shape index: {}]
  %s2 = inlined_call_operand.hbm [shape: bf16[1,128,128], index: 2, kind: input, shape index: {}]
  %s3 = inlined_call_operand.hbm [shape: bf16[128,128], index: 3, kind: input, shape index: {}]
  %s4 = inlined_call_operand.vmem [shape: f32[2,1,128], index: 4, kind: input, shape index: {}]
  %s5 = inlined_call_operand.vmem [shape: f32[1,128], index: 5, kind: input, shape index: {}]
  %s6 = inlined_call_operand.hbm [shape: f32[16,128], index: 6, kind: output, shape index: {}]
  %s7 = sld [smem:[#allocation0]]
  $region50: #{tpu_custom_call.1} parent=0
    _
  %s9 = ssub.s32 1, %s7
  %s10 = scalar_select 0, %s9, %s7
  $region1: #{tpu_custom_call.1} parent=0
    #allocation2 [shape = 'u8[4096]{0}', space=vmem, size = 0x1000, scoped, tag = 'input window, operand 0, single buffered']
    #allocation3 [shape = 's32[1]{0}', space=sflag, size = 0x4, scoped, tag = 'scoped memory for tpu_custom_call.1']
    #allocation4 [shape = 's32[1]{0}', space=sflag, size = 0x4, scoped, tag = 'scoped memory for tpu_custom_call.1']
    #allocation5 [shape = 'u8[32768]{0}', space=vmem, size = 0x8000, scoped, tag = 'input window, operand 1, single buffered']
    #allocation6 [shape = 's32[1]{0}', space=sflag, size = 0x4, scoped, tag = 'scoped memory for tpu_custom_call.1']
    #allocation7 [shape = 'u8[32768]{0}', space=vmem, size = 0x8000, scoped, tag = 'input window, operand 2, single buffered']
    #allocation8 [shape = 'u8[32768]{0}', space=vmem, size = 0x8000, scoped, tag = 'input window, operand 3, single buffered']
    #allocation9 [shape = 's32[1]{0}', space=sflag, size = 0x4, scoped, tag = 'scoped memory for tpu_custom_call.1']
    #allocation10 [shape = 'u8[8192]{0}', space=vmem, size = 0x2000, scoped, tag = 'output window, operand 0, single buffered']
    %11 = vsyncpa [#allocation3], 0
    %12 = vsyncpa [#allocation6], 0
    %13 = vsyncpa [#allocation9], 0
    %14 = vsyncpa [#allocation4], 0
    // Predicated region
    $region2: #{tpu_custom_call.1} parent=1 // pred_check
      _
    $region3: #{tpu_custom_call.1} parent=1 // pred_check_branch
      %16 = sbr.rel (0) target = $region5
    $region4: #{tpu_custom_call.1} parent=1 // pred_region
      %s18 = ssub.s32 128, 128
      %19 = vsyncadd [#allocation3], %s18
      %s20 = sshll.u32 [#allocation2], 4
      %s21 = int_to_ptr.vmem [resolvable:$true] %s20
      %26 = dma.hbm_to_vmem [thread:$0]  %s0, 128, %s21, [#allocation3], 64, 64, 4
    $region5: #{tpu_custom_call.1} parent=1 // pred_fallthru
      _
    // Predicated region
    $region6: #{tpu_custom_call.1} parent=1 // pred_check
      _
    $region7: #{tpu_custom_call.1} parent=1 // pred_check_branch
      %28 = sbr.rel (0) target = $region9
    $region8: #{tpu_custom_call.1} parent=1 // pred_region
      %s30 = ssub.s32 1024, 1024
      %31 = vsyncadd [#allocation6], %s30
      %s32 = sshll.u32 [#allocation5], 4
      %s33 = int_to_ptr.vmem [resolvable:$true] %s32
      %38 = dma.hbm_to_vmem [thread:$0]  %s1, 1024, %s33, [#allocation6], 64, 64, 4
    $region9: #{tpu_custom_call.1} parent=1 // pred_fallthru
      _
    // Predicated region
    $region10: #{tpu_custom_call.1} parent=1 // pred_check
      _
    $region11: #{tpu_custom_call.1} parent=1 // pred_check_branch
      %40 = sbr.rel (0) target = $region13
    $region12: #{tpu_custom_call.1} parent=1 // pred_region
      %s42 = ssub.s32 1024, 1024
      %43 = vsyncadd [#allocation6], %s42
      %s44 = sshll.u32 [#allocation7], 4
      %s45 = int_to_ptr.vmem [resolvable:$true] %s44
      %50 = dma.hbm_to_vmem [thread:$0]  %s2, 1024, %s45, [#allocation6], 64, 64, 4
    $region13: #{tpu_custom_call.1} parent=1 // pred_fallthru
      _
    // Predicated region
    $region14: #{tpu_custom_call.1} parent=1 // pred_check
      _
    $region15: #{tpu_custom_call.1} parent=1 // pred_check_branch
      %52 = sbr.rel (0) target = $region17
    $region16: #{tpu_custom_call.1} parent=1 // pred_region
      %s54 = ssub.s32 1024, 1024
      %55 = vsyncadd [#allocation9], %s54
      %s56 = sshll.u32 [#allocation8], 4
      %s57 = int_to_ptr.vmem [resolvable:$true] %s56
      %62 = dma.hbm_to_vmem [thread:$0]  %s3, 1024, %s57, [#allocation9], 64, 64, 4
    $region17: #{tpu_custom_call.1} parent=1 // pred_fallthru
      _
    // Predicated region
    $region18: #{tpu_custom_call.1} parent=1 // pred_check
      _
    $region19: #{tpu_custom_call.1} parent=1 // pred_check_branch
      %64 = sbr.rel (0) target = $region21
    $region20: #{tpu_custom_call.1} parent=1 // pred_region
      _
    $region21: #{tpu_custom_call.1} parent=1 // pred_fallthru
      _
    // Predicated region
    $region22: #{tpu_custom_call.1} parent=1 // pred_check
      _
    $region23: #{tpu_custom_call.1} parent=1 // pred_check_branch
      %66 = sbr.rel (0) target = $region25
    $region24: #{tpu_custom_call.1} parent=1 // pred_region
      _
    $region25: #{tpu_custom_call.1} parent=1 // pred_fallthru
      _
    // Predicated region
    $region26: #{tpu_custom_call.1} parent=1 // pred_check
      _
    $region27: #{tpu_custom_call.1} parent=1 // pred_check_branch
      %68 = sbr.rel (0) target = $region29
    $region28: #{tpu_custom_call.1} parent=1 // pred_region
      %69 = dma.done [#allocation3], 128
    $region29: #{tpu_custom_call.1} parent=1 // pred_fallthru
      _
    // Predicated region
    $region30: #{tpu_custom_call.1} parent=1 // pred_check
      _
    $region31: #{tpu_custom_call.1} parent=1 // pred_check_branch
      %71 = sbr.rel (0) target = $region33
    $region32: #{tpu_custom_call.1} parent=1 // pred_region
      %72 = dma.done [#allocation6], 1024
    $region33: #{tpu_custom_call.1} parent=1 // pred_fallthru
      _
    // Predicated region
    $region34: #{tpu_custom_call.1} parent=1 // pred_check
      _
    $region35: #{tpu_custom_call.1} parent=1 // pred_check_branch
      %74 = sbr.rel (0) target = $region37
    $region36: #{tpu_custom_call.1} parent=1 // pred_region
      %75 = dma.done [#allocation6], 1024
    $region37: #{tpu_custom_call.1} parent=1 // pred_fallthru
      _
    // Predicated region
    $region38: #{tpu_custom_call.1} parent=1 // pred_check
      _
    $region39: #{tpu_custom_call.1} parent=1 // pred_check_branch
      %77 = sbr.rel (0) target = $region41
    $region40: #{tpu_custom_call.1} parent=1 // pred_region
      %78 = dma.done [#allocation9], 1024
    $region41: #{tpu_custom_call.1} parent=1 // pred_fallthru
      _
    %v80 = vld [vmem:[#allocation2] sm:$0xf]
    %v81 = vld [vmem:[#allocation2 + $0x4] sm:$0xf]
    %v82 = vld [vmem:[#allocation5] sm:$0xf]
    %v83 = vld [vmem:[#allocation5 + $0x4] sm:$0xf]
    %v84 = vld [vmem:[#allocation5 + $0x8] sm:$0xf]
    %v85 = vld [vmem:[#allocation5 + $0xc] sm:$0xf]
    %v86 = vld [vmem:[#allocation5 + $0x10] sm:$0xf]
    %v87 = vld [vmem:[#allocation5 + $0x14] sm:$0xf]
    %v88 = vld [vmem:[#allocation5 + $0x18] sm:$0xf]
    %v89 = vld [vmem:[#allocation5 + $0x1c] sm:$0xf]
    %v90 = vld [vmem:[#allocation5 + $0x20] sm:$0xf]
    %v91 = vld [vmem:[#allocation5 + $0x24] sm:$0xf]
    %v92 = vld [vmem:[#allocation5 + $0x28] sm:$0xf]
    %v93 = vld [vmem:[#allocation5 + $0x2c] sm:$0xf]
    %v94 = vld [vmem:[#allocation5 + $0x30] sm:$0xf]
    %v95 = vld [vmem:[#allocation5 + $0x34] sm:$0xf]
    %v96 = vld [vmem:[#allocation5 + $0x38] sm:$0xf]
    %v97 = vld [vmem:[#allocation5 + $0x3c] sm:$0xf]
    %v98 = vld [vmem:[%s4] sm:$0x1]
    %v100 = vlaneseq
    %v101 = vshrl.u32 %v100, 7
    %v102 = vsub.s32 0, %v101
    %v103 = vrot.slane %v98, %v102
    %v107 = vunpack.c.l.b16 %v80
    %v108 = vunpack.c.l.b16 %v81
    %v109 = vpack.c.b16 %v108, %v107
    %v127 = vunpack.c.l.b16 %v82
    %v128 = vunpack.c.l.b16 %v83
    %v129 = vunpack.c.l.b16 %v84
    %v130 = vunpack.c.l.b16 %v85
    %v131 = vunpack.c.l.b16 %v86
    %v132 = vunpack.c.l.b16 %v87
    %v133 = vunpack.c.l.b16 %v88
    %v134 = vunpack.c.l.b16 %v89
    %v135 = vunpack.c.l.b16 %v90
    %v136 = vunpack.c.l.b16 %v91
    %v137 = vunpack.c.l.b16 %v92
    %v138 = vunpack.c.l.b16 %v93
    %v139 = vunpack.c.l.b16 %v94
    %v140 = vunpack.c.l.b16 %v95
    %v141 = vunpack.c.l.b16 %v96
    %v142 = vunpack.c.l.b16 %v97
    %v143 = vpack.c.b16 %v128, %v127
    %v144 = vpack.c.b16 %v130, %v129
    %v145 = vpack.c.b16 %v132, %v131
    %v146 = vpack.c.b16 %v134, %v133
    %v147 = vpack.c.b16 %v136, %v135
    %v148 = vpack.c.b16 %v138, %v137
    %v149 = vpack.c.b16 %v140, %v139
    %v150 = vpack.c.b16 %v142, %v141
    %159 = vmatprep.subr.bf16.mxu0 0
    %160 = vmatpush1.bf16.msra.mxu0 %v150
    %161 = vmatprep.subr.bf16.mxu0 0
    %162 = vmatpush1.bf16.msra.mxu0 %v149
    %163 = vmatprep.subr.bf16.mxu0 0
    %164 = vmatpush1.bf16.msra.mxu0 %v148
    %165 = vmatprep.subr.bf16.mxu0 0
    %166 = vmatpush1.bf16.msra.mxu0 %v147
    %167 = vmatprep.subr.bf16.mxu0 0
    %168 = vmatpush1.bf16.msra.mxu0 %v146
    %169 = vmatprep.subr.bf16.mxu0 0
    %170 = vmatpush1.bf16.msra.mxu0 %v145
    %171 = vmatprep.subr.bf16.mxu0 0
    %172 = vmatpush1.bf16.msra.mxu0 %v144
    %173 = vmatprep.subr.bf16.mxu0 0
    %174 = vmatpush1.bf16.msra.mxu0 %v143
    %175 = vmatprep.subr.bf16.mxu0 0
    %176 = vmatpush2.bf16.msra.mxu0 0
    %177 = vmatprep.subr.bf16.mxu0 0
    %178 = vmatpush2.bf16.msra.mxu0 0
    %179 = vmatprep.subr.bf16.mxu0 0
    %180 = vmatpush2.bf16.msra.mxu0 0
    %181 = vmatprep.subr.bf16.mxu0 0
    %182 = vmatpush2.bf16.msra.mxu0 0
    %183 = vmatprep.subr.bf16.mxu0 0
    %184 = vmatpush2.bf16.msra.mxu0 0
    %185 = vmatprep.subr.bf16.mxu0 0
    %186 = vmatpush2.bf16.msra.mxu0 0
    %187 = vmatprep.subr.bf16.mxu0 0
    %188 = vmatpush2.bf16.msra.mxu0 0
    %189 = vmatprep.subr.bf16.mxu0 0
    %190 = vmatpush2.bf16.msra.mxu0 0
    %191 = vmatprep.mubr.bf16.mxu0 0
    %192 = vmatmul.mubr.bf16.gmra.mxu0 %v109
    %v193 = vpop.f32.mrf.mxu0
    %v194 = vadd.f32 %v103, %v193
    %v195 = vpop.f32.mrf.mxu0
    %v196 = vpop.f32.mrf.mxu0
    %v197 = vadd.f32 %v103, %v196
    %v198 = vpop.f32.mrf.mxu0
    %199 = vdwg.mxu0
    %v200 = vtanh.pop %v194
    %v201 = vtanh.pop %v197
    %v202 = vpack.c.bf16 %v201, %v200
    %v203 = vld [vmem:[#allocation7] sm:$0xf]
    %v204 = vld [vmem:[#allocation7 + $0x4] sm:$0xf]
    %v205 = vld [vmem:[#allocation7 + $0x8] sm:$0xf]
    %v206 = vld [vmem:[#allocation7 + $0xc] sm:$0xf]
    %v207 = vld [vmem:[#allocation7 + $0x10] sm:$0xf]
    %v208 = vld [vmem:[#allocation7 + $0x14] sm:$0xf]
    %v209 = vld [vmem:[#allocation7 + $0x18] sm:$0xf]
    %v210 = vld [vmem:[#allocation7 + $0x1c] sm:$0xf]
    %v211 = vld [vmem:[#allocation7 + $0x20] sm:$0xf]
    %v212 = vld [vmem:[#allocation7 + $0x24] sm:$0xf]
    %v213 = vld [vmem:[#allocation7 + $0x28] sm:$0xf]
    %v214 = vld [vmem:[#allocation7 + $0x2c] sm:$0xf]
    %v215 = vld [vmem:[#allocation7 + $0x30] sm:$0xf]
    %v216 = vld [vmem:[#allocation7 + $0x34] sm:$0xf]
    %v217 = vld [vmem:[#allocation7 + $0x38] sm:$0xf]
    %v218 = vld [vmem:[#allocation7 + $0x3c] sm:$0xf]
    %s219 = scalar_lea.vmem %s4, 1
    %v220 = vld [vmem:[%s219] sm:$0x1]
    %v222 = vlaneseq
    %v223 = vshrl.u32 %v222, 7
    %v224 = vsub.s32 0, %v223
    %v225 = vrot.slane %v220, %v224
    %v243 = vunpack.c.l.b16 %v203
    %v244 = vunpack.c.l.b16 %v204
    %v245 = vunpack.c.l.b16 %v205
    %v246 = vunpack.c.l.b16 %v206
    %v247 = vunpack.c.l.b16 %v207
    %v248 = vunpack.c.l.b16 %v208
    %v249 = vunpack.c.l.b16 %v209
    %v250 = vunpack.c.l.b16 %v210
    %v251 = vunpack.c.l.b16 %v211
    %v252 = vunpack.c.l.b16 %v212
    %v253 = vunpack.c.l.b16 %v213
    %v254 = vunpack.c.l.b16 %v214
    %v255 = vunpack.c.l.b16 %v215
    %v256 = vunpack.c.l.b16 %v216
    %v257 = vunpack.c.l.b16 %v217
    %v258 = vunpack.c.l.b16 %v218
    %v259 = vpack.c.b16 %v244, %v243
    %v260 = vpack.c.b16 %v246, %v245
    %v261 = vpack.c.b16 %v248, %v247
    %v262 = vpack.c.b16 %v250, %v249
    %v263 = vpack.c.b16 %v252, %v251
    %v264 = vpack.c.b16 %v254, %v253
    %v265 = vpack.c.b16 %v256, %v255
    %v266 = vpack.c.b16 %v258, %v257
    %275 = vmatprep.subr.bf16.mxu0 0
    %276 = vmatpush1.bf16.msra.mxu0 %v266
    %277 = vmatprep.subr.bf16.mxu0 0
    %278 = vmatpush1.bf16.msra.mxu0 %v265
    %279 = vmatprep.subr.bf16.mxu0 0
    %280 = vmatpush1.bf16.msra.mxu0 %v264
    %281 = vmatprep.subr.bf16.mxu0 0
    %282 = vmatpush1.bf16.msra.mxu0 %v263
    %283 = vmatprep.subr.bf16.mxu0 0
    %284 = vmatpush1.bf16.msra.mxu0 %v262
    %285 = vmatprep.subr.bf16.mxu0 0
    %286 = vmatpush1.bf16.msra.mxu0 %v261
    %287 = vmatprep.subr.bf16.mxu0 0
    %288 = vmatpush1.bf16.msra.mxu0 %v260
    %289 = vmatprep.subr.bf16.mxu0 0
    %290 = vmatpush1.bf16.msra.mxu0 %v259
    %291 = vmatprep.subr.bf16.mxu0 0
    %292 = vmatpush2.bf16.msra.mxu0 0
    %293 = vmatprep.subr.bf16.mxu0 0
    %294 = vmatpush2.bf16.msra.mxu0 0
    %295 = vmatprep.subr.bf16.mxu0 0
    %296 = vmatpush2.bf16.msra.mxu0 0
    %297 = vmatprep.subr.bf16.mxu0 0
    %298 = vmatpush2.bf16.msra.mxu0 0
    %299 = vmatprep.subr.bf16.mxu0 0
    %300 = vmatpush2.bf16.msra.mxu0 0
    %301 = vmatprep.subr.bf16.mxu0 0
    %302 = vmatpush2.bf16.msra.mxu0 0
    %303 = vmatprep.subr.bf16.mxu0 0
    %304 = vmatpush2.bf16.msra.mxu0 0
    %305 = vmatprep.subr.bf16.mxu0 0
    %306 = vmatpush2.bf16.msra.mxu0 0
    %307 = vmatprep.mubr.bf16.mxu0 0
    %308 = vmatmul.mubr.bf16.gmra.mxu0 %v202
    %v309 = vpop.f32.mrf.mxu0
    %v310 = vadd.f32 %v225, %v309
    %v311 = vpop.f32.mrf.mxu0
    %v312 = vpop.f32.mrf.mxu0
    %v313 = vadd.f32 %v225, %v312
    %v314 = vpop.f32.mrf.mxu0
    %315 = vdwg.mxu0
    %v316 = vtanh.pop %v310
    %v317 = vtanh.pop %v313
    %v318 = vpack.c.bf16 %v317, %v316
    %v319 = vld [vmem:[#allocation8] sm:$0xf]
    %v320 = vld [vmem:[#allocation8 + $0x4] sm:$0xf]
    %v321 = vld [vmem:[#allocation8 + $0x8] sm:$0xf]
    %v322 = vld [vmem:[#allocation8 + $0xc] sm:$0xf]
    %v323 = vld [vmem:[#allocation8 + $0x10] sm:$0xf]
    %v324 = vld [vmem:[#allocation8 + $0x14] sm:$0xf]
    %v325 = vld [vmem:[#allocation8 + $0x18] sm:$0xf]
    %v326 = vld [vmem:[#allocation8 + $0x1c] sm:$0xf]
    %v327 = vld [vmem:[#allocation8 + $0x20] sm:$0xf]
    %v328 = vld [vmem:[#allocation8 + $0x24] sm:$0xf]
    %v329 = vld [vmem:[#allocation8 + $0x28] sm:$0xf]
    %v330 = vld [vmem:[#allocation8 + $0x2c] sm:$0xf]
    %v331 = vld [vmem:[#allocation8 + $0x30] sm:$0xf]
    %v332 = vld [vmem:[#allocation8 + $0x34] sm:$0xf]
    %v333 = vld [vmem:[#allocation8 + $0x38] sm:$0xf]
    %v334 = vld [vmem:[#allocation8 + $0x3c] sm:$0xf]
    %v335 = vld [vmem:[%s5] sm:$0x1]
    %v337 = vlaneseq
    %v338 = vshrl.u32 %v337, 7
    %v339 = vsub.s32 0, %v338
    %v340 = vrot.slane %v335, %v339
    %v358 = vunpack.c.l.b16 %v319
    %v359 = vunpack.c.l.b16 %v320
    %v360 = vunpack.c.l.b16 %v321
    %v361 = vunpack.c.l.b16 %v322
    %v362 = vunpack.c.l.b16 %v323
    %v363 = vunpack.c.l.b16 %v324
    %v364 = vunpack.c.l.b16 %v325
    %v365 = vunpack.c.l.b16 %v326
    %v366 = vunpack.c.l.b16 %v327
    %v367 = vunpack.c.l.b16 %v328
    %v368 = vunpack.c.l.b16 %v329
    %v369 = vunpack.c.l.b16 %v330
    %v370 = vunpack.c.l.b16 %v331
    %v371 = vunpack.c.l.b16 %v332
    %v372 = vunpack.c.l.b16 %v333
    %v373 = vunpack.c.l.b16 %v334
    %v374 = vpack.c.b16 %v359, %v358
    %v375 = vpack.c.b16 %v361, %v360
    %v376 = vpack.c.b16 %v363, %v362
    %v377 = vpack.c.b16 %v365, %v364
    %v378 = vpack.c.b16 %v367, %v366
    %v379 = vpack.c.b16 %v369, %v368
    %v380 = vpack.c.b16 %v371, %v370
    %v381 = vpack.c.b16 %v373, %v372
    %390 = vmatprep.subr.bf16.mxu0 0
    %391 = vmatpush1.bf16.msra.mxu0 %v381
    %392 = vmatprep.subr.bf16.mxu0 0
    %393 = vmatpush1.bf16.msra.mxu0 %v380
    %394 = vmatprep.subr.bf16.mxu0 0
    %395 = vmatpush1.bf16.msra.mxu0 %v379
    %396 = vmatprep.subr.bf16.mxu0 0
    %397 = vmatpush1.bf16.msra.mxu0 %v378
    %398 = vmatprep.subr.bf16.mxu0 0
    %399 = vmatpush1.bf16.msra.mxu0 %v377
    %400 = vmatprep.subr.bf16.mxu0 0
    %401 = vmatpush1.bf16.msra.mxu0 %v376
    %402 = vmatprep.subr.bf16.mxu0 0
    %403 = vmatpush1.bf16.msra.mxu0 %v375
    %404 = vmatprep.subr.bf16.mxu0 0
    %405 = vmatpush1.bf16.msra.mxu0 %v374
    %406 = vmatprep.subr.bf16.mxu0 0
    %407 = vmatpush2.bf16.msra.mxu0 0
    %408 = vmatprep.subr.bf16.mxu0 0
    %409 = vmatpush2.bf16.msra.mxu0 0
    %410 = vmatprep.subr.bf16.mxu0 0
    %411 = vmatpush2.bf16.msra.mxu0 0
    %412 = vmatprep.subr.bf16.mxu0 0
    %413 = vmatpush2.bf16.msra.mxu0 0
    %414 = vmatprep.subr.bf16.mxu0 0
    %415 = vmatpush2.bf16.msra.mxu0 0
    %416 = vmatprep.subr.bf16.mxu0 0
    %417 = vmatpush2.bf16.msra.mxu0 0
    %418 = vmatprep.subr.bf16.mxu0 0
    %419 = vmatpush2.bf16.msra.mxu0 0
    %420 = vmatprep.subr.bf16.mxu0 0
    %421 = vmatpush2.bf16.msra.mxu0 0
    %422 = vmatprep.mubr.bf16.mxu0 0
    %423 = vmatmul.mubr.bf16.gmra.mxu0 %v318
    %v424 = vpop.f32.mrf.mxu0
    %v425 = vadd.f32 %v340, %v424
    %v426 = vpop.f32.mrf.mxu0
    %v427 = vpop.f32.mrf.mxu0
    %v428 = vadd.f32 %v340, %v427
    %v429 = vpop.f32.mrf.mxu0
    %430 = vdwg.mxu0
    %431 = vst [vmem:[#allocation10] sm:$0xff] %v425
    %432 = vst [vmem:[#allocation10 + $0x8] sm:$0xff] %v428
    // Predicated region
    $region42: #{tpu_custom_call.1} parent=1 // pred_check
      _
    $region43: #{tpu_custom_call.1} parent=1 // pred_check_branch
      %434 = sbr.rel (0) target = $region45
    $region44: #{tpu_custom_call.1} parent=1 // pred_region
      %s436 = ssub.s32 256, 256
      %437 = vsyncadd [#allocation4], %s436
      %s438 = sshll.u32 [#allocation10], 4
      %s439 = int_to_ptr.vmem [resolvable:$true] %s438
      %444 = dma.vmem_to_hbm [thread:$0]  %s439, 256, %s6, [#allocation4], 128, 128, 8
    $region45: #{tpu_custom_call.1} parent=1 // pred_fallthru
      _
    // Predicated region
    $region46: #{tpu_custom_call.1} parent=1 // pred_check
      _
    $region47: #{tpu_custom_call.1} parent=1 // pred_check_branch
      %446 = sbr.rel (0) target = $region49
    $region48: #{tpu_custom_call.1} parent=1 // pred_region
      %447 = dma.done [#allocation4], 256
    $region49: #{tpu_custom_call.1} parent=1 // pred_fallthru
      _
    %448 = vsyncpa [#allocation3], 1
    %449 = vsyncpa [#allocation6], 1
    %450 = vsyncpa [#allocation9], 1
    %451 = vsyncpa [#allocation4], 1

</llo_original>
